<compile_context>
chip_gen: v5e
topology: v5e:2x2
jax: 0.10.0
libtpu: 0.0.40
codegen_flags: <defaults>
</compile_context>

<pallas_src>
import jax
import jax.numpy as jnp
from jax.experimental import pallas as pl
from jax.experimental.pallas import tpu as pltpu


def _attention_kernel(x_ref, wT_ref, params_ref, ctx_ref, attn_ref):
    # x_ref:      (Bb, T, H) f32  batch-block of the sequence
    # wT_ref:     (H, H)     bf16 attention.weight transposed -> y = x @ wT + b
    # params_ref: (3, H)     f32  row 0: bias, row 1: context-vector weight,
    #                             row 2: special-index mask * special_weight
    # ctx_ref:    (Bb, H)    f32  context vectors
    # attn_ref:   (Bb, T)    f32  attention weights
    Bb, T, H = x_ref.shape

    x3 = x_ref[...]                                   # (Bb, T, H) f32
    x2 = x3.reshape(Bb * T, H)                        # merge leading dims

    b_row = params_ref[0:1, :]                        # (1, H)
    cw_row = params_ref[1:2, :]                       # (1, H)
    mask_row = params_ref[2:3, :]                     # (1, H)  weight pre-folded

    # attention_weights = tanh(Linear(lstm_output)) -- the one real MXU matmul.
    # bf16 operands, f32 accumulation.
    h = jnp.tanh(
        jnp.dot(x2.astype(jnp.bfloat16), wT_ref[...],
                preferred_element_type=jnp.float32)
        + b_row
    )                                                 # (Bb*T, H) f32
    h3 = h.reshape(Bb, T, H)

    # context_vector projection + special-index sum as VPU lane reductions
    # (degenerate N=1 projections; no MXU matmuls needed).
    scores = jnp.sum(h3 * cw_row, axis=-1)            # (Bb, T)
    special = jnp.sum(x3 * mask_row, axis=-1)         # (Bb, T)
    s = scores + special

    # softmax over the sequence axis (lanes); exact normalization.
    m = jnp.max(s, axis=-1, keepdims=True)            # (Bb, 1)
    e = jnp.exp(s - m)                                # (Bb, T)
    w = e / jnp.sum(e, axis=-1, keepdims=True)        # (Bb, T)

    attn_ref[...] = w                                 # lane-dense store

    # context = sum_t w[b,t] * x[b,t,:]  (VPU multiply + sublane reduce)
    ctx_ref[...] = jnp.sum(w[:, :, None] * x3, axis=1)  # (Bb, H)


def _vmem_capacity_bytes():
    try:
        return int(pltpu.get_tpu_info().vmem_capacity_bytes)
    except Exception:
        return 64 * 1024 * 1024          # conservative (v7x) fallback


def _pick_batch_block(B, T, H, vmem_budget_bytes):
    """Batch rows per grid step: big enough to fill the MXU / amortize the
    ~0.35us grid-step overhead, small enough for the VMEM budget, and at least
    two grid steps when possible so v7x's two TensorCores both get work."""
    per_row = (2 * T * H * 4             # x block, double-buffered, f32
               + T * H * (2 + 4 + 4)     # bf16 matmul copy + h temp + reshape copy
               + 2 * (H + T) * 4)        # ctx/attn output blocks, double-buffered
    fixed = 2 * H * H * 2 + 6 * H * 4    # weight matrix (<=2 buffers) + params
    budget = max(vmem_budget_bytes - fixed, per_row)
    bb_vmem = max(1, budget // per_row)
    bb_rows = max(1, 2048 // max(T, 1))  # ~2048 matmul rows per step
    bb = int(min(bb_vmem, bb_rows))
    if bb >= B:
        if B >= 16:                      # split so the parallel axis has >=2 steps
            return max(8, ((B // 2) // 8) * 8)
        return B                         # single step: block == full batch dim
    return max(8, (bb // 8) * 8)         # multi-step: 8-aligned sublane blocks


def _pallas_attention(x, wT, params, Bb, vmem_limit_bytes, cost_estimate,
                      single_buffer_invariants):
    B_pad, T, H = x.shape
    invariant_kwargs = {}
    if single_buffer_invariants:
        # Grid-invariant operands are DMA'd once; drop their second buffer.
        invariant_kwargs = dict(pipeline_mode=pl.Buffered(buffer_count=1))
    return pl.pallas_call(
        _attention_kernel,
        out_shape=(
            jax.ShapeDtypeStruct((B_pad, H), jnp.float32),
            jax.ShapeDtypeStruct((B_pad, T), jnp.float32),
        ),
        grid_spec=pltpu.PrefetchScalarGridSpec(
            num_scalar_prefetch=0,
            grid=(B_pad // Bb,),
            in_specs=[
                pl.BlockSpec((Bb, T, H), lambda i: (i, 0, 0)),
                pl.BlockSpec((H, H), lambda i: (0, 0), **invariant_kwargs),
                pl.BlockSpec((3, H), lambda i: (0, 0), **invariant_kwargs),
            ],
            out_specs=[
                pl.BlockSpec((Bb, H), lambda i: (i, 0)),
                pl.BlockSpec((Bb, T), lambda i: (i, 0)),
            ],
        ),
        compiler_params=pltpu.CompilerParams(
            dimension_semantics=("parallel",),
            vmem_limit_bytes=int(vmem_limit_bytes)),
        cost_estimate=cost_estimate,
    )(x, wT, params)


def attention_forward(lstm_output, attn_w, attn_b, ctx_w, special_indices,
                      special_weight=10.0, batch_block=None):
    """lstm_output: (B, T, H) f32.  Returns (context (B, H), attn_weights (B, T)).

    Best throughput when H (and ideally T) are multiples of 128 (lane-dense tiles).
    """
    B, T, H = lstm_output.shape

    vmem_cap = _vmem_capacity_bytes()
    vmem_limit = (vmem_cap * 3) // 4      # ~48 MiB v7x, ~96 MiB v5e/v6e

    Bb = batch_block if batch_block is not None else _pick_batch_block(
        B, T, H, vmem_limit)
    B_pad = pl.cdiv(B, Bb) * Bb

    x = lstm_output.astype(jnp.float32)
    if B_pad != B:
        x = jnp.pad(x, ((0, B_pad - B), (0, 0), (0, 0)))

    # bf16 weight matrix for the MXU (f32 accumulation happens in-kernel).
    wT = attn_w.T.astype(jnp.bfloat16)                 # (H, H): y = x @ wT + b

    idx = jnp.asarray(special_indices, dtype=jnp.int32)
    # .add (not .set) so duplicate indices are counted twice, matching PyTorch;
    # special_weight is folded in here so the kernel skips one VPU multiply.
    mask = jnp.zeros((H,), jnp.float32).at[idx].add(1.0) * jnp.float32(special_weight)
    params = jnp.stack([attn_b.astype(jnp.float32),
                        ctx_w.reshape(H).astype(jnp.float32),
                        mask], axis=0)                 # (3, H)

    cost = pl.CostEstimate(
        flops=2 * B_pad * T * H * H + 6 * B_pad * T * H,
        transcendentals=B_pad * T * H + B_pad * T,
        bytes_accessed=(B_pad * T * H * 4 + H * H * 2 + 3 * H * 4
                        + B_pad * H * 4 + B_pad * T * 4),
    )

    try:
        ctx, attn = jax.block_until_ready(
            _pallas_attention(x, wT, params, Bb, vmem_limit, cost,
                              single_buffer_invariants=True))
    except Exception:
        # pipeline_mode=pl.Buffered(1) unsupported on this jax version: fall
        # back to default double-buffered specs (correctness identical).
        ctx, attn = _pallas_attention(x, wT, params, Bb, vmem_limit, cost,
                                      single_buffer_invariants=False)

    if B_pad != B:
        ctx = ctx[:B]
        attn = attn[:B]
    return ctx, attn


def _reference(lstm_output, attn_w, attn_b, ctx_w, special_indices, special_weight):
    h = jnp.tanh(jnp.einsum("bth,oh->bto", lstm_output, attn_w) + attn_b)
    scores = jnp.einsum("bth,oh->bto", h, ctx_w)[..., 0]
    special = lstm_output[:, :, jnp.asarray(special_indices)].sum(axis=-1)
    scores = scores + special_weight * special
    w = jax.nn.softmax(scores, axis=1)
    ctx = jnp.sum(w[..., None] * lstm_output, axis=1)
    return ctx, w


if __name__ == "__main__":
    hidden_size = 128                    # matches the PyTorch module's hidden_size
    special_indices = [13, 14, 15, 16, 17]
    special_weight = 10.0
    B, T, H = 4, 8, hidden_size

    key = jax.random.PRNGKey(0)
    k1, k2, k3, k4 = jax.random.split(key, 4)
    lstm_output = jax.random.normal(k1, (B, T, H), dtype=jnp.float32)
    attn_w = jax.random.normal(k2, (H, H), dtype=jnp.float32) * 0.1   # nn.Linear(H, H).weight
    attn_b = jax.random.normal(k3, (H,), dtype=jnp.float32) * 0.1     # nn.Linear(H, H).bias
    ctx_w = jax.random.normal(k4, (1, H), dtype=jnp.float32) * 0.1    # nn.Linear(H, 1, bias=False).weight

    ctx, attn = attention_forward(lstm_output, attn_w, attn_b, ctx_w,
                                  special_indices, special_weight)
    ctx, attn = jax.block_until_ready((ctx, attn))

    ctx_ref, attn_ref = _reference(lstm_output, attn_w, attn_b, ctx_w,
                                   special_indices, special_weight)
    # bf16 MXU operands (f32 accumulation) -> small deviation from f32 reference
    assert jnp.allclose(attn, attn_ref, atol=5e-2, rtol=5e-2)
    assert jnp.allclose(ctx, ctx_ref, atol=5e-2, rtol=5e-2)
    # exact softmax normalization: every attention row sums to 1
    assert float(jnp.max(jnp.abs(jnp.sum(attn, axis=1) - 1.0))) < 1e-4

    print("KERNEL_OK")
</pallas_src>

<mosaic_0001>
module attributes {stable_mosaic.version = 11 : i64} {
  func.func @_attention_kernel(%arg0: i32, %arg1: memref<4x8x128xf32, #tpu.memory_space<vmem>>, %arg2: memref<128x128xbf16, #tpu.memory_space<vmem>>, %arg3: memref<3x128xf32, #tpu.memory_space<vmem>>, %arg4: memref<4x128xf32, #tpu.memory_space<vmem>>, %arg5: memref<4x8xf32, #tpu.memory_space<vmem>>) attributes {dimension_semantics = [#tpu.dimension_semantics<parallel>], iteration_bounds = array<i64: 1>, scalar_prefetch = 0 : i64, scratch_operands = 0 : i64, tpu.core_type = #tpu.core_type<tc>, window_params = [{transform_indices = @transform_0, window_bounds = array<i64: 4, 8, 128>}, {pipeline_mode = #tpu.pipeline_mode<synchronous>, transform_indices = @transform_1, window_bounds = array<i64: 128, 128>}, {pipeline_mode = #tpu.pipeline_mode<synchronous>, transform_indices = @transform_2, window_bounds = array<i64: 3, 128>}, {transform_indices = @transform_3, window_bounds = array<i64: 4, 128>}, {transform_indices = @transform_4, window_bounds = array<i64: 4, 8>}]} {
    %c0 = arith.constant 0 : index
    %c0_0 = arith.constant 0 : index
    %c0_1 = arith.constant 0 : index
    %0 = vector.load %arg1[%c0, %c0_0, %c0_1] : memref<4x8x128xf32, #tpu.memory_space<vmem>>, vector<4x8x128xf32>
    %1 = vector.shape_cast %0 : vector<4x8x128xf32> to vector<32x128xf32>
    %c0_2 = arith.constant 0 : index
    %c0_3 = arith.constant 0 : index
    %2 = vector.load %arg3[%c0_2, %c0_3] : memref<3x128xf32, #tpu.memory_space<vmem>>, vector<1x128xf32>
    %c1 = arith.constant 1 : index
    %c0_4 = arith.constant 0 : index
    %3 = vector.load %arg3[%c1, %c0_4] : memref<3x128xf32, #tpu.memory_space<vmem>>, vector<1x128xf32>
    %c2 = arith.constant 2 : index
    %c0_5 = arith.constant 0 : index
    %4 = vector.load %arg3[%c2, %c0_5] : memref<3x128xf32, #tpu.memory_space<vmem>>, vector<1x128xf32>
    %5 = arith.truncf %1 : vector<32x128xf32> to vector<32x128xbf16>
    %c0_6 = arith.constant 0 : index
    %c0_7 = arith.constant 0 : index
    %6 = vector.load %arg2[%c0_6, %c0_7] : memref<128x128xbf16, #tpu.memory_space<vmem>>, vector<128x128xbf16>
    %cst = arith.constant dense<0.000000e+00> : vector<32x128xf32>
    %7 = tpu.matmul %5, %6, %cst {dimension_numbers = #tpu.dot_dimension_numbers<[1], [0], [0], [1], [0, 0, 1, 1], [], []>} : vector<32x128xbf16>, vector<128x128xbf16>, vector<32x128xf32> -> vector<32x128xf32>
    %8 = vector.broadcast %2 : vector<1x128xf32> to vector<32x128xf32>
    %9 = arith.addf %7, %8 : vector<32x128xf32>
    %10 = math.tanh %9 : vector<32x128xf32>
    %11 = vector.shape_cast %10 : vector<32x128xf32> to vector<4x8x128xf32>
    %12 = vector.shape_cast %3 : vector<1x128xf32> to vector<1x1x128xf32>
    %13 = vector.broadcast %12 : vector<1x1x128xf32> to vector<4x8x128xf32>
    %14 = arith.mulf %11, %13 : vector<4x8x128xf32>
    %cst_8 = arith.constant dense<0.000000e+00> : vector<4x8xf32>
    %15 = vector.multi_reduction <add>, %14, %cst_8 [2] : vector<4x8x128xf32> to vector<4x8xf32>
    %16 = vector.shape_cast %4 : vector<1x128xf32> to vector<1x1x128xf32>
    %17 = vector.broadcast %16 : vector<1x1x128xf32> to vector<4x8x128xf32>
    %18 = arith.mulf %0, %17 : vector<4x8x128xf32>
    %cst_9 = arith.constant dense<0.000000e+00> : vector<4x8xf32>
    %19 = vector.multi_reduction <add>, %18, %cst_9 [2] : vector<4x8x128xf32> to vector<4x8xf32>
    %20 = arith.addf %15, %19 : vector<4x8xf32>
    %cst_10 = arith.constant dense<0xFF800000> : vector<4xf32>
    %21 = vector.multi_reduction <maximumf>, %20, %cst_10 [1] : vector<4x8xf32> to vector<4xf32>
    %22 = vector.shape_cast %21 : vector<4xf32> to vector<4x1xf32>
    %23 = vector.broadcast %22 : vector<4x1xf32> to vector<4x8xf32>
    %24 = arith.subf %20, %23 : vector<4x8xf32>
    %25 = math.exp %24 : vector<4x8xf32>
    %cst_11 = arith.constant dense<0.000000e+00> : vector<4xf32>
    %26 = vector.multi_reduction <add>, %25, %cst_11 [1] : vector<4x8xf32> to vector<4xf32>
    %27 = vector.shape_cast %26 : vector<4xf32> to vector<4x1xf32>
    %28 = vector.broadcast %27 : vector<4x1xf32> to vector<4x8xf32>
    %29 = arith.divf %25, %28 : vector<4x8xf32>
    %c0_12 = arith.constant 0 : index
    %c0_13 = arith.constant 0 : index
    %30 = vector.load %arg5[%c0_12, %c0_13] : memref<4x8xf32, #tpu.memory_space<vmem>>, vector<4x8xf32>
    tpu.vector_store %arg5[%c0_12, %c0_13], %29 {strides = array<i32>} : memref<4x8xf32, #tpu.memory_space<vmem>>, vector<4x8xf32>,
    %31 = vector.shape_cast %29 : vector<4x8xf32> to vector<4x8x1xf32>
    %32 = vector.broadcast %31 : vector<4x8x1xf32> to vector<4x8x128xf32>
    %33 = arith.mulf %32, %0 : vector<4x8x128xf32>
    %cst_14 = arith.constant dense<0.000000e+00> : vector<4x128xf32>
    %34 = vector.multi_reduction <add>, %33, %cst_14 [1] : vector<4x8x128xf32> to vector<4x128xf32>
    %c0_15 = arith.constant 0 : index
    %c0_16 = arith.constant 0 : index
    %35 = vector.load %arg4[%c0_15, %c0_16] : memref<4x128xf32, #tpu.memory_space<vmem>>, vector<4x128xf32>
    tpu.vector_store %arg4[%c0_15, %c0_16], %34 {strides = array<i32>} : memref<4x128xf32, #tpu.memory_space<vmem>>, vector<4x128xf32>,
    return
  }
  func.func @transform_0(%arg0: i32) -> (i32, i32, i32) {
    %c0_i32 = arith.constant 0 : i32
    %c0_i32_0 = arith.constant 0 : i32
    %c0_i32_1 = arith.constant 0 : i32
    return %arg0, %c0_i32, %c0_i32_0 : i32, i32, i32
  }
  func.func @transform_1(%arg0: i32) -> (i32, i32) {
    %c0_i32 = arith.constant 0 : i32
    %c0_i32_0 = arith.constant 0 : i32
    %c0_i32_1 = arith.constant 0 : i32
    return %c0_i32, %c0_i32_0 : i32, i32
  }
  func.func @transform_2(%arg0: i32) -> (i32, i32) {
    %c0_i32 = arith.constant 0 : i32
    %c0_i32_0 = arith.constant 0 : i32
    %c0_i32_1 = arith.constant 0 : i32
    return %c0_i32, %c0_i32_0 : i32, i32
  }
  func.func @transform_3(%arg0: i32) -> (i32, i32) {
    %c0_i32 = arith.constant 0 : i32
    %c0_i32_0 = arith.constant 0 : i32
    return %arg0, %c0_i32 : i32, i32
  }
  func.func @transform_4(%arg0: i32) -> (i32, i32) {
    %c0_i32 = arith.constant 0 : i32
    %c0_i32_0 = arith.constant 0 : i32
    return %arg0, %c0_i32 : i32, i32
  }
}

module attributes {stable_mosaic.version = 11 : i64} {
  func.func @_attention_kernel(%arg0: i32, %arg1: memref<4x8x128xf32, #tpu.memory_space<vmem>>, %arg2: memref<128x128xbf16, #tpu.memory_space<vmem>>, %arg3: memref<3x128xf32, #tpu.memory_space<vmem>>, %arg4: memref<4x128xf32, #tpu.memory_space<vmem>>, %arg5: memref<4x8xf32, #tpu.memory_space<vmem>>) attributes {dimension_semantics = [#tpu.dimension_semantics<parallel>], iteration_bounds = array<i64: 1>, scalar_prefetch = 0 : i64, scratch_operands = 0 : i64, tpu.core_type = #tpu.core_type<tc>, window_params = [{transform_indices = @transform_0, window_bounds = array<i64: 4, 8, 128>}, {pipeline_mode = #tpu.pipeline_mode<synchronous>, transform_indices = @transform_1, window_bounds = array<i64: 128, 128>}, {pipeline_mode = #tpu.pipeline_mode<synchronous>, transform_indices = @transform_2, window_bounds = array<i64: 3, 128>}, {transform_indices = @transform_3, window_bounds = array<i64: 4, 128>}, {transform_indices = @transform_4, window_bounds = array<i64: 4, 8>}]} {
    %c0 = arith.constant 0 : index
    %c0_0 = arith.constant 0 : index
    %c0_1 = arith.constant 0 : index
    %0 = vector.load %arg1[%c0, %c0_0, %c0_1] : memref<4x8x128xf32, #tpu.memory_space<vmem>>, vector<4x8x128xf32>
    %1 = vector.shape_cast %0 : vector<4x8x128xf32> to vector<32x128xf32>
    %c0_2 = arith.constant 0 : index
    %c0_3 = arith.constant 0 : index
    %2 = vector.load %arg3[%c0_2, %c0_3] : memref<3x128xf32, #tpu.memory_space<vmem>>, vector<1x128xf32>
    %c1 = arith.constant 1 : index
    %c0_4 = arith.constant 0 : index
    %3 = vector.load %arg3[%c1, %c0_4] : memref<3x128xf32, #tpu.memory_space<vmem>>, vector<1x128xf32>
    %c2 = arith.constant 2 : index
    %c0_5 = arith.constant 0 : index
    %4 = vector.load %arg3[%c2, %c0_5] : memref<3x128xf32, #tpu.memory_space<vmem>>, vector<1x128xf32>
    %5 = arith.truncf %1 : vector<32x128xf32> to vector<32x128xbf16>
    %c0_6 = arith.constant 0 : index
    %c0_7 = arith.constant 0 : index
    %6 = vector.load %arg2[%c0_6, %c0_7] : memref<128x128xbf16, #tpu.memory_space<vmem>>, vector<128x128xbf16>
    %cst = arith.constant dense<0.000000e+00> : vector<32x128xf32>
    %7 = tpu.matmul %5, %6, %cst {dimension_numbers = #tpu.dot_dimension_numbers<[1], [0], [0], [1], [0, 0, 1, 1], [], []>} : vector<32x128xbf16>, vector<128x128xbf16>, vector<32x128xf32> -> vector<32x128xf32>
    %8 = vector.broadcast %2 : vector<1x128xf32> to vector<32x128xf32>
    %9 = arith.addf %7, %8 : vector<32x128xf32>
    %10 = math.tanh %9 : vector<32x128xf32>
    %11 = vector.shape_cast %10 : vector<32x128xf32> to vector<4x8x128xf32>
    %12 = vector.shape_cast %3 : vector<1x128xf32> to vector<1x1x128xf32>
    %13 = vector.broadcast %12 : vector<1x1x128xf32> to vector<4x8x128xf32>
    %14 = arith.mulf %11, %13 : vector<4x8x128xf32>
    %cst_8 = arith.constant dense<0.000000e+00> : vector<4x8xf32>
    %15 = vector.multi_reduction <add>, %14, %cst_8 [2] : vector<4x8x128xf32> to vector<4x8xf32>
    %16 = vector.shape_cast %4 : vector<1x128xf32> to vector<1x1x128xf32>
    %17 = vector.broadcast %16 : vector<1x1x128xf32> to vector<4x8x128xf32>
    %18 = arith.mulf %0, %17 : vector<4x8x128xf32>
    %cst_9 = arith.constant dense<0.000000e+00> : vector<4x8xf32>
    %19 = vector.multi_reduction <add>, %18, %cst_9 [2] : vector<4x8x128xf32> to vector<4x8xf32>
    %20 = arith.addf %15, %19 : vector<4x8xf32>
    %cst_10 = arith.constant dense<0xFF800000> : vector<4xf32>
    %21 = vector.multi_reduction <maximumf>, %20, %cst_10 [1] : vector<4x8xf32> to vector<4xf32>
    %22 = vector.shape_cast %21 : vector<4xf32> to vector<4x1xf32>
    %23 = vector.broadcast %22 : vector<4x1xf32> to vector<4x8xf32>
    %24 = arith.subf %20, %23 : vector<4x8xf32>
    %25 = math.exp %24 : vector<4x8xf32>
    %cst_11 = arith.constant dense<0.000000e+00> : vector<4xf32>
    %26 = vector.multi_reduction <add>, %25, %cst_11 [1] : vector<4x8xf32> to vector<4xf32>
    %27 = vector.shape_cast %26 : vector<4xf32> to vector<4x1xf32>
    %28 = vector.broadcast %27 : vector<4x1xf32> to vector<4x8xf32>
    %29 = arith.divf %25, %28 : vector<4x8xf32>
    %c0_12 = arith.constant 0 : index
    %c0_13 = arith.constant 0 : index
    %30 = vector.load %arg5[%c0_12, %c0_13] : memref<4x8xf32, #tpu.memory_space<vmem>>, vector<4x8xf32>
    tpu.vector_store %arg5[%c0_12, %c0_13], %29 {strides = array<i32>} : memref<4x8xf32, #tpu.memory_space<vmem>>, vector<4x8xf32>,
    %31 = vector.shape_cast %29 : vector<4x8xf32> to vector<4x8x1xf32>
    %32 = vector.broadcast %31 : vector<4x8x1xf32> to vector<4x8x128xf32>
    %33 = arith.mulf %32, %0 : vector<4x8x128xf32>
    %cst_14 = arith.constant dense<0.000000e+00> : vector<4x128xf32>
    %34 = vector.multi_reduction <add>, %33, %cst_14 [1] : vector<4x8x128xf32> to vector<4x128xf32>
    %c0_15 = arith.constant 0 : index
    %c0_16 = arith.constant 0 : index
    %35 = vector.load %arg4[%c0_15, %c0_16] : memref<4x128xf32, #tpu.memory_space<vmem>>, vector<4x128xf32>
    tpu.vector_store %arg4[%c0_15, %c0_16], %34 {strides = array<i32>} : memref<4x128xf32, #tpu.memory_space<vmem>>, vector<4x128xf32>,
    return
  }
  func.func @transform_0(%arg0: i32) -> (i32, i32, i32) {
    %c0_i32 = arith.constant 0 : i32
    %c0_i32_0 = arith.constant 0 : i32
    %c0_i32_1 = arith.constant 0 : i32
    return %arg0, %c0_i32, %c0_i32_0 : i32, i32, i32
  }
  func.func @transform_1(%arg0: i32) -> (i32, i32) {
    %c0_i32 = arith.constant 0 : i32
    %c0_i32_0 = arith.constant 0 : i32
    %c0_i32_1 = arith.constant 0 : i32
    return %c0_i32, %c0_i32_0 : i32, i32
  }
  func.func @transform_2(%arg0: i32) -> (i32, i32) {
    %c0_i32 = arith.constant 0 : i32
    %c0_i32_0 = arith.constant 0 : i32
    %c0_i32_1 = arith.constant 0 : i32
    return %c0_i32, %c0_i32_0 : i32, i32
  }
  func.func @transform_3(%arg0: i32) -> (i32, i32) {
    %c0_i32 = arith.constant 0 : i32
    %c0_i32_0 = arith.constant 0 : i32
    return %arg0, %c0_i32 : i32, i32
  }
  func.func @transform_4(%arg0: i32) -> (i32, i32) {
    %c0_i32 = arith.constant 0 : i32
    %c0_i32_0 = arith.constant 0 : i32
    return %arg0, %c0_i32 : i32, i32
  }
}

</mosaic_0001>

<llo_original>
// kernel: tpu_custom_call.1
$region0: #{tpu_custom_call.1}
  #allocation0 [shape = 'u32[]', space=smem, size = 0x4, offset = 0x4, fixed_abs, tag = 'smem constant byte address 0x4 - core index']
  #allocation1 [shape = 'u32[72,128]{1,0:T(1,128)}', space=vmem, size = 0x9000, scoped, tag = 'internal scratch']
  %s0 = inlined_call_operand.hbm [shape: f32[4,8,128], index: 0, kind: input, shape index: {}]
  %s1 = inlined_call_operand.hbm [shape: bf16[128,128], index: 1, kind: input, shape index: {}]
  %s2 = inlined_call_operand.hbm [shape: f32[3,128], index: 2, kind: input, shape index: {}]
  %s3 = inlined_call_operand.hbm [shape: f32[4,128], index: 3, kind: output, shape index: {0}]
  %s4 = inlined_call_operand.hbm [shape: f32[4,8], index: 4, kind: output, shape index: {1}]
  %5 = xla_tuple %s3, %s4
  %s6 = sld [smem:[#allocation0]]
  $region42: #{tpu_custom_call.1} parent=0
    _
  %s8 = ssub.s32 1, %s6
  %s9 = scalar_select 0, %s8, %s6
  $region1: #{tpu_custom_call.1} parent=0
    #allocation2 [shape = 'u8[16384]{0}', space=vmem, size = 0x4000, scoped, tag = 'input window, operand 0, single buffered']
    #allocation3 [shape = 's32[1]{0}', space=sflag, size = 0x4, scoped, tag = 'scoped memory for tpu_custom_call.1']
    #allocation4 [shape = 's32[1]{0}', space=sflag, size = 0x4, scoped, tag = 'scoped memory for tpu_custom_call.1']
    #allocation5 [shape = 'u8[32768]{0}', space=vmem, size = 0x8000, scoped, tag = 'input window, operand 1, single buffered']
    #allocation6 [shape = 's32[1]{0}', space=sflag, size = 0x4, scoped, tag = 'scoped memory for tpu_custom_call.1']
    #allocation7 [shape = 'u8[2048]{0}', space=vmem, size = 0x800, scoped, tag = 'input window, operand 2, single buffered']
    #allocation8 [shape = 'u8[2048]{0}', space=vmem, size = 0x800, scoped, tag = 'output window, operand 0, single buffered']
    #allocation9 [shape = 'u8[2048]{0}', space=vmem, size = 0x800, scoped, tag = 'output window, operand 1, single buffered']
    #allocation10 [shape = 's32[1]{0}', space=sflag, size = 0x4, scoped, tag = 'scoped memory for tpu_custom_call.1']
    %10 = vsyncpa [#allocation3], 0
    %11 = vsyncpa [#allocation6], 0
    %12 = vsyncpa [#allocation4], 0
    %13 = vsyncpa [#allocation10], 0
    // Predicated region
    $region2: #{tpu_custom_call.1} parent=1 // pred_check
      _
    $region3: #{tpu_custom_call.1} parent=1 // pred_check_branch
      %15 = sbr.rel (0) target = $region5
    $region4: #{tpu_custom_call.1} parent=1 // pred_region
      %17 = vsyncadd [#allocation3], 0
      %s18 = sshll.u32 %s0, 4
      %s19 = int_to_ptr.hbm [resolvable:$true] %s18
      %s20 = sshll.u32 [#allocation2], 4
      %s21 = int_to_ptr.vmem [resolvable:$true] %s20
      %26 = dma.hbm_to_vmem [thread:$0]  %s19, 512, %s21, [#allocation3], 128, 128, 8
    $region5: #{tpu_custom_call.1} parent=1 // pred_fallthru
      _
    // Predicated region
    $region6: #{tpu_custom_call.1} parent=1 // pred_check
      _
    $region7: #{tpu_custom_call.1} parent=1 // pred_check_branch
      %28 = sbr.rel (0) target = $region9
    $region8: #{tpu_custom_call.1} parent=1 // pred_region
      %30 = vsyncadd [#allocation6], 0
      %s31 = sshll.u32 %s1, 4
      %s32 = int_to_ptr.hbm [resolvable:$true] %s31
      %s33 = sshll.u32 [#allocation5], 4
      %s34 = int_to_ptr.vmem [resolvable:$true] %s33
      %39 = dma.hbm_to_vmem [thread:$0]  %s32, 1024, %s34, [#allocation6], 64, 64, 4
    $region9: #{tpu_custom_call.1} parent=1 // pred_fallthru
      _
    // Predicated region
    $region10: #{tpu_custom_call.1} parent=1 // pred_check
      _
    $region11: #{tpu_custom_call.1} parent=1 // pred_check_branch
      %41 = sbr.rel (0) target = $region13
    $region12: #{tpu_custom_call.1} parent=1 // pred_region
      %43 = vsyncadd [#allocation6], 0
      %s45 = sshll.u32 %s2, 4
      %s46 = int_to_ptr.hbm [resolvable:$true] %s45
      %s47 = sshll.u32 [#allocation7], 4
      %s48 = int_to_ptr.vmem [resolvable:$true] %s47
      %50 = dma.hbm_to_vmem [thread:$0]  %s46, 64, %s48, [#allocation6]
    $region13: #{tpu_custom_call.1} parent=1 // pred_fallthru
      _
    // Predicated region
    $region14: #{tpu_custom_call.1} parent=1 // pred_check
      _
    $region15: #{tpu_custom_call.1} parent=1 // pred_check_branch
      %52 = sbr.rel (0) target = $region17
    $region16: #{tpu_custom_call.1} parent=1 // pred_region
      %54 = dma.done [#allocation3], 512
    $region17: #{tpu_custom_call.1} parent=1 // pred_fallthru
      _
    // Predicated region
    $region18: #{tpu_custom_call.1} parent=1 // pred_check
      _
    $region19: #{tpu_custom_call.1} parent=1 // pred_check_branch
      %56 = sbr.rel (0) target = $region21
    $region20: #{tpu_custom_call.1} parent=1 // pred_region
      %58 = dma.done [#allocation6], 1024
    $region21: #{tpu_custom_call.1} parent=1 // pred_fallthru
      _
    // Predicated region
    $region22: #{tpu_custom_call.1} parent=1 // pred_check
      _
    $region23: #{tpu_custom_call.1} parent=1 // pred_check_branch
      %60 = sbr.rel (0) target = $region25
    $region24: #{tpu_custom_call.1} parent=1 // pred_region
      %62 = dma.done [#allocation6], 64
    $region25: #{tpu_custom_call.1} parent=1 // pred_fallthru
      _
    %v63 = vld [vmem:[#allocation2] sm:$0xff]
    %v64 = vld [vmem:[#allocation2 + $0x8] sm:$0xff]
    %v65 = vld [vmem:[#allocation2 + $0x10] sm:$0xff]
    %v66 = vld [vmem:[#allocation2 + $0x18] sm:$0xff]
    %v67 = vld [vmem:[#allocation7] sm:$0x1]
    %v68 = vld [vmem:[#allocation7 + $0x1] sm:$0x1]
    %v69 = vld [vmem:[#allocation7 + $0x2] sm:$0x1]
    %v70 = vpack.c.bf16 %v64, %v63
    %v71 = vpack.c.bf16 %v66, %v65
    %v72 = vld [vmem:[#allocation5] sm:$0xf]
    %v73 = vld [vmem:[#allocation5 + $0x4] sm:$0xf]
    %v74 = vld [vmem:[#allocation5 + $0x8] sm:$0xf]
    %v75 = vld [vmem:[#allocation5 + $0xc] sm:$0xf]
    %v76 = vld [vmem:[#allocation5 + $0x10] sm:$0xf]
    %v77 = vld [vmem:[#allocation5 + $0x14] sm:$0xf]
    %v78 = vld [vmem:[#allocation5 + $0x18] sm:$0xf]
    %v79 = vld [vmem:[#allocation5 + $0x1c] sm:$0xf]
    %v80 = vld [vmem:[#allocation5 + $0x20] sm:$0xf]
    %v81 = vld [vmem:[#allocation5 + $0x24] sm:$0xf]
    %v82 = vld [vmem:[#allocation5 + $0x28] sm:$0xf]
    %v83 = vld [vmem:[#allocation5 + $0x2c] sm:$0xf]
    %v84 = vld [vmem:[#allocation5 + $0x30] sm:$0xf]
    %v85 = vld [vmem:[#allocation5 + $0x34] sm:$0xf]
    %v86 = vld [vmem:[#allocation5 + $0x38] sm:$0xf]
    %v87 = vld [vmem:[#allocation5 + $0x3c] sm:$0xf]
    %v88 = vperm.slane %v67, 0
    %v105 = vunpack.c.l.b16 %v72
    %v106 = vunpack.c.l.b16 %v73
    %v107 = vunpack.c.l.b16 %v74
    %v108 = vunpack.c.l.b16 %v75
    %v109 = vunpack.c.l.b16 %v76
    %v110 = vunpack.c.l.b16 %v77
    %v111 = vunpack.c.l.b16 %v78
    %v112 = vunpack.c.l.b16 %v79
    %v113 = vunpack.c.l.b16 %v80
    %v114 = vunpack.c.l.b16 %v81
    %v115 = vunpack.c.l.b16 %v82
    %v116 = vunpack.c.l.b16 %v83
    %v117 = vunpack.c.l.b16 %v84
    %v118 = vunpack.c.l.b16 %v85
    %v119 = vunpack.c.l.b16 %v86
    %v120 = vunpack.c.l.b16 %v87
    %v121 = vpack.c.b16 %v106, %v105
    %v122 = vpack.c.b16 %v108, %v107
    %v123 = vpack.c.b16 %v110, %v109
    %v124 = vpack.c.b16 %v112, %v111
    %v125 = vpack.c.b16 %v114, %v113
    %v126 = vpack.c.b16 %v116, %v115
    %v127 = vpack.c.b16 %v118, %v117
    %v128 = vpack.c.b16 %v120, %v119
    %137 = vmatpush.bf16.msra.mxu0 %v128
    %138 = vmatpush.bf16.msra.mxu0 %v127
    %139 = vmatpush.bf16.msra.mxu0 %v126
    %140 = vmatpush.bf16.msra.mxu0 %v125
    %141 = vmatpush.bf16.msra.mxu0 %v124
    %142 = vmatpush.bf16.msra.mxu0 %v123
    %143 = vmatpush.bf16.msra.mxu0 %v122
    %144 = vmatpush.bf16.msra.mxu0 %v121
    %145 = vmatmul.bf16.gmra.mxu0 %v70
    %v146 = vpop.f32.mrf.mxu0
    %v147 = vadd.f32 %v88, %v146
    %v148 = vpop.f32.mrf.mxu0
    %v149 = vadd.f32 %v88, %v148
    %150 = vmatmul.bf16.gmra.mxu0 %v71
    %v151 = vpop.f32.mrf.mxu0
    %v152 = vadd.f32 %v88, %v151
    %v153 = vpop.f32.mrf.mxu0
    %v154 = vadd.f32 %v88, %v153
    %155 = vdwg.mxu0
    %v156 = vtanh.pop %v147
    %v157 = vtanh.pop %v149
    %v158 = vtanh.pop %v152
    %v159 = vtanh.pop %v154
    %v160 = vperm.slane %v68, 0
    %v161 = vmul.f32 %v156, %v160
    %v162 = vmul.f32 %v157, %v160
    %v163 = vmul.f32 %v158, %v160
    %v164 = vmul.f32 %v159, %v160
    %165 = vadd.xlane.f32.xlu0 %v161
    %v166 = vpop.xlane.xlu0 %165
    %167 = vadd.xlane.f32.xlu0 %v162
    %v168 = vpop.xlane.xlu0 %167
    %169 = vadd.xlane.f32.xlu0 %v163
    %v170 = vpop.xlane.xlu0 %169
    %171 = vadd.xlane.f32.xlu0 %v164
    %v172 = vpop.xlane.xlu0 %171
    %v173 = vperm.slane %v69, 0
    %v174 = vmul.f32 %v63, %v173
    %v175 = vmul.f32 %v64, %v173
    %v176 = vmul.f32 %v65, %v173
    %v177 = vmul.f32 %v66, %v173
    %178 = vadd.xlane.f32.xlu0 %v174
    %v179 = vpop.xlane.xlu0 %178
    %180 = vadd.xlane.f32.xlu0 %v175
    %v181 = vpop.xlane.xlu0 %180
    %182 = vadd.xlane.f32.xlu0 %v176
    %v183 = vpop.xlane.xlu0 %182
    %184 = vadd.xlane.f32.xlu0 %v177
    %v185 = vpop.xlane.xlu0 %184
    %v186 = vadd.f32 %v166, %v179
    %v187 = vadd.f32 %v168, %v181
    %v188 = vadd.f32 %v170, %v183
    %v189 = vadd.f32 %v172, %v185
    %v194 = vlaneseq
    %v195 = vand.u32 %v194, 127
    %v196 = vperm.slane %v186, %v195
    %v197 = vperm.slane %v187, %v195
    %v198 = vperm.slane %v188, %v195
    %v199 = vperm.slane %v189, %v195
    %vm200 = vcmask 1041409
    %v201 = vsel %vm200, %v197, %v196
    %vm202 = vcmask 1042434
    %v203 = vsel %vm202, %v198, %v201
    %vm204 = vcmask 1043459
    %v205 = vsel %vm204, %v199, %v203
    %vm207 = vcmask 60416
    %v208 = vsel %vm207, %v205, -inf
    %209 = vmax.xlane.f32.xlu0 %v208
    %v210 = vpop.xlane.xlu0 %209
    %v212 = vperm.slane %v210, 0
    %v213 = vperm.slane %v210, 1
    %v214 = vperm.slane %v210, 2
    %v215 = vperm.slane %v210, 3
    %v220 = vsub.f32 %v186, %v212
    %v221 = vsub.f32 %v187, %v213
    %v222 = vsub.f32 %v188, %v214
    %v223 = vsub.f32 %v189, %v215
    %v224 = vmul.f32 %v220, 1.442695
    %v225 = vpow.pop %v224
    %v226 = vmul.f32 %v221, 1.442695
    %v227 = vpow.pop %v226
    %v228 = vmul.f32 %v222, 1.442695
    %v229 = vpow.pop %v228
    %v230 = vmul.f32 %v223, 1.442695
    %v231 = vpow.pop %v230
    %236 = vset.pattern.permute.xlu0 0
    %237 = vperm.xlu0 %236, %v225
    %v238 = vpop.permute.xlu0 %237
    %239 = vset.pattern.permute.xlu0 0
    %240 = vperm.xlu0 %239, %v227
    %v241 = vpop.permute.xlu0 %240
    %242 = vset.pattern.permute.xlu0 0
    %243 = vperm.xlu0 %242, %v229
    %v244 = vpop.permute.xlu0 %243
    %245 = vset.pattern.permute.xlu0 0
    %246 = vperm.xlu0 %245, %v231
    %v247 = vpop.permute.xlu0 %246
    %v248 = vperm.slane %v238, %v195
    %v249 = vperm.slane %v241, %v195
    %v250 = vperm.slane %v244, %v195
    %v251 = vperm.slane %v247, %v195
    %v252 = vsel %vm200, %v249, %v248
    %v253 = vsel %vm202, %v250, %v252
    %v254 = vsel %vm204, %v251, %v253
    %v256 = vsel %vm207, %v254, 0.0
    %257 = vadd.xlane.f32.xlu0 %v256
    %v258 = vpop.xlane.xlu0 %257
    %v260 = vperm.slane %v258, 0
    %v261 = vperm.slane %v258, 1
    %v262 = vperm.slane %v258, 2
    %v263 = vperm.slane %v258, 3
    %v268 = vrcp.pop %v260
    %v269 = vmul.f32 %v260, %v268
    %v270 = vsub.f32 1.0, %v269
    %v271 = vmul.f32 %v268, %v270
    %v272 = vadd.f32 %v268, %v271
    %vm273 = vweird.f32 %v260
    %vm274 = vweird.f32 %v268
    %vm275 = vmor %vm273, %vm274
    %v276 = vsel %vm275, %v268, %v272
    %v277 = vand.u32 2147483647, %v260
    %vm278 = vcmp.eq.f32.partialorder %v277, 8.507059e+37
    %v279 = vand.u32 %v260, 2147483648
    %v280 = vor.u32 1.1754944e-38, %v279
    %v281 = vsel %vm278, %v280, %v276
    %v282 = vmul.f32 %v225, %v281
    %v283 = vrcp.pop %v261
    %v284 = vmul.f32 %v261, %v283
    %v285 = vsub.f32 1.0, %v284
    %v286 = vmul.f32 %v283, %v285
    %v287 = vadd.f32 %v283, %v286
    %vm288 = vweird.f32 %v261
    %vm289 = vweird.f32 %v283
    %vm290 = vmor %vm288, %vm289
    %v291 = vsel %vm290, %v283, %v287
    %v292 = vand.u32 2147483647, %v261
    %vm293 = vcmp.eq.f32.partialorder %v292, 8.507059e+37
    %v294 = vand.u32 %v261, 2147483648
    %v295 = vor.u32 1.1754944e-38, %v294
    %v296 = vsel %vm293, %v295, %v291
    %v297 = vmul.f32 %v227, %v296
    %v298 = vrcp.pop %v262
    %v299 = vmul.f32 %v262, %v298
    %v300 = vsub.f32 1.0, %v299
    %v301 = vmul.f32 %v298, %v300
    %v302 = vadd.f32 %v298, %v301
    %vm303 = vweird.f32 %v262
    %vm304 = vweird.f32 %v298
    %vm305 = vmor %vm303, %vm304
    %v306 = vsel %vm305, %v298, %v302
    %v307 = vand.u32 2147483647, %v262
    %vm308 = vcmp.eq.f32.partialorder %v307, 8.507059e+37
    %v309 = vand.u32 %v262, 2147483648
    %v310 = vor.u32 1.1754944e-38, %v309
    %v311 = vsel %vm308, %v310, %v306
    %v312 = vmul.f32 %v229, %v311
    %v313 = vrcp.pop %v263
    %v314 = vmul.f32 %v263, %v313
    %v315 = vsub.f32 1.0, %v314
    %v316 = vmul.f32 %v313, %v315
    %v317 = vadd.f32 %v313, %v316
    %vm318 = vweird.f32 %v263
    %vm319 = vweird.f32 %v313
    %vm320 = vmor %vm318, %vm319
    %v321 = vsel %vm320, %v313, %v317
    %v322 = vand.u32 2147483647, %v263
    %vm323 = vcmp.eq.f32.partialorder %v322, 8.507059e+37
    %v324 = vand.u32 %v263, 2147483648
    %v325 = vor.u32 1.1754944e-38, %v324
    %v326 = vsel %vm323, %v325, %v321
    %v327 = vmul.f32 %v231, %v326
    %332 = vset.pattern.permute.xlu0 0
    %333 = vperm.xlu0 %332, %v282
    %v334 = vpop.permute.xlu0 %333
    %335 = vset.pattern.permute.xlu0 0
    %336 = vperm.xlu0 %335, %v297
    %v337 = vpop.permute.xlu0 %336
    %338 = vset.pattern.permute.xlu0 0
    %339 = vperm.xlu0 %338, %v312
    %v340 = vpop.permute.xlu0 %339
    %341 = vset.pattern.permute.xlu0 0
    %342 = vperm.xlu0 %341, %v327
    %v343 = vpop.permute.xlu0 %342
    %v344 = vperm.slane %v334, %v195
    %v345 = vperm.slane %v337, %v195
    %v346 = vperm.slane %v340, %v195
    %v347 = vperm.slane %v343, %v195
    %v348 = vsel %vm200, %v345, %v344
    %v349 = vsel %vm202, %v346, %v348
    %v350 = vsel %vm204, %v347, %v349
    %352 = vst.msk [vmem:[#allocation9] sm:$0xf] %vm207, %v350
    %v357 = vmul.f32 %v334, %v63
    %v358 = vmul.f32 %v337, %v64
    %v359 = vmul.f32 %v340, %v65
    %v360 = vmul.f32 %v343, %v66
    %v361 = vrot.slane %v357, 4
    %v362 = vadd.f32 %v357, %v361
    %v363 = vrot.slane %v362, 2
    %v364 = vadd.f32 %v362, %v363
    %v365 = vrot.slane %v364, 1
    %v366 = vadd.f32 %v364, %v365
    %v367 = vrot.slane %v358, 4
    %v368 = vadd.f32 %v358, %v367
    %v369 = vrot.slane %v368, 2
    %v370 = vadd.f32 %v368, %v369
    %v371 = vrot.slane %v370, 1
    %v372 = vadd.f32 %v370, %v371
    %v373 = vrot.slane %v359, 4
    %v374 = vadd.f32 %v359, %v373
    %v375 = vrot.slane %v374, 2
    %v376 = vadd.f32 %v374, %v375
    %v377 = vrot.slane %v376, 1
    %v378 = vadd.f32 %v376, %v377
    %v379 = vrot.slane %v360, 4
    %v380 = vadd.f32 %v360, %v379
    %v381 = vrot.slane %v380, 2
    %v382 = vadd.f32 %v380, %v381
    %v383 = vrot.slane %v382, 1
    %v384 = vadd.f32 %v382, %v383
    %v389 = vsel %vm200, %v372, %v366
    %v390 = vsel %vm202, %v378, %v389
    %v391 = vsel %vm204, %v384, %v390
    %393 = vst [vmem:[#allocation8] sm:$0xf] %v391
    // Predicated region
    $region26: #{tpu_custom_call.1} parent=1 // pred_check
      _
    $region27: #{tpu_custom_call.1} parent=1 // pred_check_branch
      %395 = sbr.rel (0) target = $region29
    $region28: #{tpu_custom_call.1} parent=1 // pred_region
      %397 = vsyncadd [#allocation4], 0
      %s399 = sshll.u32 [#allocation8], 4
      %s400 = int_to_ptr.vmem [resolvable:$true] %s399
      %s401 = sshll.u32 %s3, 4
      %s402 = int_to_ptr.hbm [resolvable:$true] %s401
      %404 = dma.vmem_to_hbm [thread:$0]  %s400, 64, %s402, [#allocation4]
    $region29: #{tpu_custom_call.1} parent=1 // pred_fallthru
      _
    // Predicated region
    $region30: #{tpu_custom_call.1} parent=1 // pred_check
      _
    $region31: #{tpu_custom_call.1} parent=1 // pred_check_branch
      %406 = sbr.rel (0) target = $region33
    $region32: #{tpu_custom_call.1} parent=1 // pred_region
      %408 = vsyncadd [#allocation10], 0
      %s410 = sshll.u32 [#allocation9], 4
      %s411 = int_to_ptr.vmem [resolvable:$true] %s410
      %s412 = sshll.u32 %s4, 4
      %s413 = int_to_ptr.hbm [resolvable:$true] %s412
      %415 = dma.vmem_to_hbm [thread:$0]  %s411, 64, %s413, [#allocation10]
    $region33: #{tpu_custom_call.1} parent=1 // pred_fallthru
      _
    // Predicated region
    $region34: #{tpu_custom_call.1} parent=1 // pred_check
      _
    $region35: #{tpu_custom_call.1} parent=1 // pred_check_branch
      %417 = sbr.rel (0) target = $region37
    $region36: #{tpu_custom_call.1} parent=1 // pred_region
      %419 = dma.done [#allocation4], 64
    $region37: #{tpu_custom_call.1} parent=1 // pred_fallthru
      _
    // Predicated region
    $region38: #{tpu_custom_call.1} parent=1 // pred_check
      _
    $region39: #{tpu_custom_call.1} parent=1 // pred_check_branch
      %421 = sbr.rel (0) target = $region41
    $region40: #{tpu_custom_call.1} parent=1 // pred_region
      %423 = dma.done [#allocation10], 64
    $region41: #{tpu_custom_call.1} parent=1 // pred_fallthru
      _
    %424 = vsyncpa [#allocation3], 1
    %425 = vsyncpa [#allocation6], 1
    %426 = vsyncpa [#allocation4], 1
    %427 = vsyncpa [#allocation10], 1

// kernel: tpu_custom_call.1
$region0: #{tpu_custom_call.1}
  #allocation0 [shape = 'u32[]', space=smem, size = 0x4, offset = 0x4, fixed_abs, tag = 'smem constant byte address 0x4 - core index']
  #allocation1 [shape = 'u32[72,128]{1,0:T(1,128)}', space=vmem, size = 0x9000, scoped, tag = 'internal scratch']
  %s0 = inlined_call_operand.hbm [shape: f32[4,8,128], index: 0, kind: input, shape index: {}]
  %s1 = inlined_call_operand.hbm [shape: bf16[128,128], index: 1, kind: input, shape index: {}]
  %s2 = inlined_call_operand.hbm [shape: f32[3,128], index: 2, kind: input, shape index: {}]
  %s3 = inlined_call_operand.hbm [shape: f32[4,128], index: 3, kind: output, shape index: {0}]
  %s4 = inlined_call_operand.hbm [shape: f32[4,8], index: 4, kind: output, shape index: {1}]
  %5 = xla_tuple %s3, %s4
  %s6 = sld [smem:[#allocation0]]
  $region42: #{tpu_custom_call.1} parent=0
    _
  %s8 = ssub.s32 1, %s6
  %s9 = scalar_select 0, %s8, %s6
  $region1: #{tpu_custom_call.1} parent=0
    #allocation2 [shape = 'u8[16384]{0}', space=vmem, size = 0x4000, scoped, tag = 'input window, operand 0, single buffered']
    #allocation3 [shape = 's32[1]{0}', space=sflag, size = 0x4, scoped, tag = 'scoped memory for tpu_custom_call.1']
    #allocation4 [shape = 's32[1]{0}', space=sflag, size = 0x4, scoped, tag = 'scoped memory for tpu_custom_call.1']
    #allocation5 [shape = 'u8[32768]{0}', space=vmem, size = 0x8000, scoped, tag = 'input window, operand 1, single buffered']
    #allocation6 [shape = 's32[1]{0}', space=sflag, size = 0x4, scoped, tag = 'scoped memory for tpu_custom_call.1']
    #allocation7 [shape = 'u8[2048]{0}', space=vmem, size = 0x800, scoped, tag = 'input window, operand 2, single buffered']
    #allocation8 [shape = 'u8[2048]{0}', space=vmem, size = 0x800, scoped, tag = 'output window, operand 0, single buffered']
    #allocation9 [shape = 'u8[2048]{0}', space=vmem, size = 0x800, scoped, tag = 'output window, operand 1, single buffered']
    #allocation10 [shape = 's32[1]{0}', space=sflag, size = 0x4, scoped, tag = 'scoped memory for tpu_custom_call.1']
    %10 = vsyncpa [#allocation3], 0
    %11 = vsyncpa [#allocation6], 0
    %12 = vsyncpa [#allocation4], 0
    %13 = vsyncpa [#allocation10], 0
    // Predicated region
    $region2: #{tpu_custom_call.1} parent=1 // pred_check
      _
    $region3: #{tpu_custom_call.1} parent=1 // pred_check_branch
      %15 = sbr.rel (0) target = $region5
    $region4: #{tpu_custom_call.1} parent=1 // pred_region
      %17 = vsyncadd [#allocation3], 0
      %s18 = sshll.u32 %s0, 4
      %s19 = int_to_ptr.hbm [resolvable:$true] %s18
      %s20 = sshll.u32 [#allocation2], 4
      %s21 = int_to_ptr.vmem [resolvable:$true] %s20
      %26 = dma.hbm_to_vmem [thread:$0]  %s19, 512, %s21, [#allocation3], 128, 128, 8
    $region5: #{tpu_custom_call.1} parent=1 // pred_fallthru
      _
    // Predicated region
    $region6: #{tpu_custom_call.1} parent=1 // pred_check
      _
    $region7: #{tpu_custom_call.1} parent=1 // pred_check_branch
      %28 = sbr.rel (0) target = $region9
    $region8: #{tpu_custom_call.1} parent=1 // pred_region
      %30 = vsyncadd [#allocation6], 0
      %s31 = sshll.u32 %s1, 4
      %s32 = int_to_ptr.hbm [resolvable:$true] %s31
      %s33 = sshll.u32 [#allocation5], 4
      %s34 = int_to_ptr.vmem [resolvable:$true] %s33
      %39 = dma.hbm_to_vmem [thread:$0]  %s32, 1024, %s34, [#allocation6], 64, 64, 4
    $region9: #{tpu_custom_call.1} parent=1 // pred_fallthru
      _
    // Predicated region
    $region10: #{tpu_custom_call.1} parent=1 // pred_check
      _
    $region11: #{tpu_custom_call.1} parent=1 // pred_check_branch
      %41 = sbr.rel (0) target = $region13
    $region12: #{tpu_custom_call.1} parent=1 // pred_region
      %43 = vsyncadd [#allocation6], 0
      %s45 = sshll.u32 %s2, 4
      %s46 = int_to_ptr.hbm [resolvable:$true] %s45
      %s47 = sshll.u32 [#allocation7], 4
      %s48 = int_to_ptr.vmem [resolvable:$true] %s47
      %50 = dma.hbm_to_vmem [thread:$0]  %s46, 64, %s48, [#allocation6]
    $region13: #{tpu_custom_call.1} parent=1 // pred_fallthru
      _
    // Predicated region
    $region14: #{tpu_custom_call.1} parent=1 // pred_check
      _
    $region15: #{tpu_custom_call.1} parent=1 // pred_check_branch
      %52 = sbr.rel (0) target = $region17
    $region16: #{tpu_custom_call.1} parent=1 // pred_region
      %54 = dma.done [#allocation3], 512
    $region17: #{tpu_custom_call.1} parent=1 // pred_fallthru
      _
    // Predicated region
    $region18: #{tpu_custom_call.1} parent=1 // pred_check
      _
    $region19: #{tpu_custom_call.1} parent=1 // pred_check_branch
      %56 = sbr.rel (0) target = $region21
    $region20: #{tpu_custom_call.1} parent=1 // pred_region
      %58 = dma.done [#allocation6], 1024
    $region21: #{tpu_custom_call.1} parent=1 // pred_fallthru
      _
    // Predicated region
    $region22: #{tpu_custom_call.1} parent=1 // pred_check
      _
    $region23: #{tpu_custom_call.1} parent=1 // pred_check_branch
      %60 = sbr.rel (0) target = $region25
    $region24: #{tpu_custom_call.1} parent=1 // pred_region
      %62 = dma.done [#allocation6], 64
    $region25: #{tpu_custom_call.1} parent=1 // pred_fallthru
      _
    %v63 = vld [vmem:[#allocation2] sm:$0xff]
    %v64 = vld [vmem:[#allocation2 + $0x8] sm:$0xff]
    %v65 = vld [vmem:[#allocation2 + $0x10] sm:$0xff]
    %v66 = vld [vmem:[#allocation2 + $0x18] sm:$0xff]
    %v67 = vld [vmem:[#allocation7] sm:$0x1]
    %v68 = vld [vmem:[#allocation7 + $0x1] sm:$0x1]
    %v69 = vld [vmem:[#allocation7 + $0x2] sm:$0x1]
    %v70 = vpack.c.bf16 %v64, %v63
    %v71 = vpack.c.bf16 %v66, %v65
    %v72 = vld [vmem:[#allocation5] sm:$0xf]
    %v73 = vld [vmem:[#allocation5 + $0x4] sm:$0xf]
    %v74 = vld [vmem:[#allocation5 + $0x8] sm:$0xf]
    %v75 = vld [vmem:[#allocation5 + $0xc] sm:$0xf]
    %v76 = vld [vmem:[#allocation5 + $0x10] sm:$0xf]
    %v77 = vld [vmem:[#allocation5 + $0x14] sm:$0xf]
    %v78 = vld [vmem:[#allocation5 + $0x18] sm:$0xf]
    %v79 = vld [vmem:[#allocation5 + $0x1c] sm:$0xf]
    %v80 = vld [vmem:[#allocation5 + $0x20] sm:$0xf]
    %v81 = vld [vmem:[#allocation5 + $0x24] sm:$0xf]
    %v82 = vld [vmem:[#allocation5 + $0x28] sm:$0xf]
    %v83 = vld [vmem:[#allocation5 + $0x2c] sm:$0xf]
    %v84 = vld [vmem:[#allocation5 + $0x30] sm:$0xf]
    %v85 = vld [vmem:[#allocation5 + $0x34] sm:$0xf]
    %v86 = vld [vmem:[#allocation5 + $0x38] sm:$0xf]
    %v87 = vld [vmem:[#allocation5 + $0x3c] sm:$0xf]
    %v88 = vperm.slane %v67, 0
    %v105 = vunpack.c.l.b16 %v72
    %v106 = vunpack.c.l.b16 %v73
    %v107 = vunpack.c.l.b16 %v74
    %v108 = vunpack.c.l.b16 %v75
    %v109 = vunpack.c.l.b16 %v76
    %v110 = vunpack.c.l.b16 %v77
    %v111 = vunpack.c.l.b16 %v78
    %v112 = vunpack.c.l.b16 %v79
    %v113 = vunpack.c.l.b16 %v80
    %v114 = vunpack.c.l.b16 %v81
    %v115 = vunpack.c.l.b16 %v82
    %v116 = vunpack.c.l.b16 %v83
    %v117 = vunpack.c.l.b16 %v84
    %v118 = vunpack.c.l.b16 %v85
    %v119 = vunpack.c.l.b16 %v86
    %v120 = vunpack.c.l.b16 %v87
    %v121 = vpack.c.b16 %v106, %v105
    %v122 = vpack.c.b16 %v108, %v107
    %v123 = vpack.c.b16 %v110, %v109
    %v124 = vpack.c.b16 %v112, %v111
    %v125 = vpack.c.b16 %v114, %v113
    %v126 = vpack.c.b16 %v116, %v115
    %v127 = vpack.c.b16 %v118, %v117
    %v128 = vpack.c.b16 %v120, %v119
    %137 = vmatpush.bf16.msra.mxu0 %v128
    %138 = vmatpush.bf16.msra.mxu0 %v127
    %139 = vmatpush.bf16.msra.mxu0 %v126
    %140 = vmatpush.bf16.msra.mxu0 %v125
    %141 = vmatpush.bf16.msra.mxu0 %v124
    %142 = vmatpush.bf16.msra.mxu0 %v123
    %143 = vmatpush.bf16.msra.mxu0 %v122
    %144 = vmatpush.bf16.msra.mxu0 %v121
    %145 = vmatmul.bf16.gmra.mxu0 %v70
    %v146 = vpop.f32.mrf.mxu0
    %v147 = vadd.f32 %v88, %v146
    %v148 = vpop.f32.mrf.mxu0
    %v149 = vadd.f32 %v88, %v148
    %150 = vmatmul.bf16.gmra.mxu0 %v71
    %v151 = vpop.f32.mrf.mxu0
    %v152 = vadd.f32 %v88, %v151
    %v153 = vpop.f32.mrf.mxu0
    %v154 = vadd.f32 %v88, %v153
    %155 = vdwg.mxu0
    %v156 = vtanh.pop %v147
    %v157 = vtanh.pop %v149
    %v158 = vtanh.pop %v152
    %v159 = vtanh.pop %v154
    %v160 = vperm.slane %v68, 0
    %v161 = vmul.f32 %v156, %v160
    %v162 = vmul.f32 %v157, %v160
    %v163 = vmul.f32 %v158, %v160
    %v164 = vmul.f32 %v159, %v160
    %165 = vadd.xlane.f32.xlu0 %v161
    %v166 = vpop.xlane.xlu0 %165
    %167 = vadd.xlane.f32.xlu0 %v162
    %v168 = vpop.xlane.xlu0 %167
    %169 = vadd.xlane.f32.xlu0 %v163
    %v170 = vpop.xlane.xlu0 %169
    %171 = vadd.xlane.f32.xlu0 %v164
    %v172 = vpop.xlane.xlu0 %171
    %v173 = vperm.slane %v69, 0
    %v174 = vmul.f32 %v63, %v173
    %v175 = vmul.f32 %v64, %v173
    %v176 = vmul.f32 %v65, %v173
    %v177 = vmul.f32 %v66, %v173
    %178 = vadd.xlane.f32.xlu0 %v174
    %v179 = vpop.xlane.xlu0 %178
    %180 = vadd.xlane.f32.xlu0 %v175
    %v181 = vpop.xlane.xlu0 %180
    %182 = vadd.xlane.f32.xlu0 %v176
    %v183 = vpop.xlane.xlu0 %182
    %184 = vadd.xlane.f32.xlu0 %v177
    %v185 = vpop.xlane.xlu0 %184
    %v186 = vadd.f32 %v166, %v179
    %v187 = vadd.f32 %v168, %v181
    %v188 = vadd.f32 %v170, %v183
    %v189 = vadd.f32 %v172, %v185
    %v194 = vlaneseq
    %v195 = vand.u32 %v194, 127
    %v196 = vperm.slane %v186, %v195
    %v197 = vperm.slane %v187, %v195
    %v198 = vperm.slane %v188, %v195
    %v199 = vperm.slane %v189, %v195
    %vm200 = vcmask 1041409
    %v201 = vsel %vm200, %v197, %v196
    %vm202 = vcmask 1042434
    %v203 = vsel %vm202, %v198, %v201
    %vm204 = vcmask 1043459
    %v205 = vsel %vm204, %v199, %v203
    %vm207 = vcmask 60416
    %v208 = vsel %vm207, %v205, -inf
    %209 = vmax.xlane.f32.xlu0 %v208
    %v210 = vpop.xlane.xlu0 %209
    %v212 = vperm.slane %v210, 0
    %v213 = vperm.slane %v210, 1
    %v214 = vperm.slane %v210, 2
    %v215 = vperm.slane %v210, 3
    %v220 = vsub.f32 %v186, %v212
    %v221 = vsub.f32 %v187, %v213
    %v222 = vsub.f32 %v188, %v214
    %v223 = vsub.f32 %v189, %v215
    %v224 = vmul.f32 %v220, 1.442695
    %v225 = vpow.pop %v224
    %v226 = vmul.f32 %v221, 1.442695
    %v227 = vpow.pop %v226
    %v228 = vmul.f32 %v222, 1.442695
    %v229 = vpow.pop %v228
    %v230 = vmul.f32 %v223, 1.442695
    %v231 = vpow.pop %v230
    %236 = vset.pattern.permute.xlu0 0
    %237 = vperm.xlu0 %236, %v225
    %v238 = vpop.permute.xlu0 %237
    %239 = vset.pattern.permute.xlu0 0
    %240 = vperm.xlu0 %239, %v227
    %v241 = vpop.permute.xlu0 %240
    %242 = vset.pattern.permute.xlu0 0
    %243 = vperm.xlu0 %242, %v229
    %v244 = vpop.permute.xlu0 %243
    %245 = vset.pattern.permute.xlu0 0
    %246 = vperm.xlu0 %245, %v231
    %v247 = vpop.permute.xlu0 %246
    %v248 = vperm.slane %v238, %v195
    %v249 = vperm.slane %v241, %v195
    %v250 = vperm.slane %v244, %v195
    %v251 = vperm.slane %v247, %v195
    %v252 = vsel %vm200, %v249, %v248
    %v253 = vsel %vm202, %v250, %v252
    %v254 = vsel %vm204, %v251, %v253
    %v256 = vsel %vm207, %v254, 0.0
    %257 = vadd.xlane.f32.xlu0 %v256
    %v258 = vpop.xlane.xlu0 %257
    %v260 = vperm.slane %v258, 0
    %v261 = vperm.slane %v258, 1
    %v262 = vperm.slane %v258, 2
    %v263 = vperm.slane %v258, 3
    %v268 = vrcp.pop %v260
    %v269 = vmul.f32 %v260, %v268
    %v270 = vsub.f32 1.0, %v269
    %v271 = vmul.f32 %v268, %v270
    %v272 = vadd.f32 %v268, %v271
    %vm273 = vweird.f32 %v260
    %vm274 = vweird.f32 %v268
    %vm275 = vmor %vm273, %vm274
    %v276 = vsel %vm275, %v268, %v272
    %v277 = vand.u32 2147483647, %v260
    %vm278 = vcmp.eq.f32.partialorder %v277, 8.507059e+37
    %v279 = vand.u32 %v260, 2147483648
    %v280 = vor.u32 1.1754944e-38, %v279
    %v281 = vsel %vm278, %v280, %v276
    %v282 = vmul.f32 %v225, %v281
    %v283 = vrcp.pop %v261
    %v284 = vmul.f32 %v261, %v283
    %v285 = vsub.f32 1.0, %v284
    %v286 = vmul.f32 %v283, %v285
    %v287 = vadd.f32 %v283, %v286
    %vm288 = vweird.f32 %v261
    %vm289 = vweird.f32 %v283
    %vm290 = vmor %vm288, %vm289
    %v291 = vsel %vm290, %v283, %v287
    %v292 = vand.u32 2147483647, %v261
    %vm293 = vcmp.eq.f32.partialorder %v292, 8.507059e+37
    %v294 = vand.u32 %v261, 2147483648
    %v295 = vor.u32 1.1754944e-38, %v294
    %v296 = vsel %vm293, %v295, %v291
    %v297 = vmul.f32 %v227, %v296
    %v298 = vrcp.pop %v262
    %v299 = vmul.f32 %v262, %v298
    %v300 = vsub.f32 1.0, %v299
    %v301 = vmul.f32 %v298, %v300
    %v302 = vadd.f32 %v298, %v301
    %vm303 = vweird.f32 %v262
    %vm304 = vweird.f32 %v298
    %vm305 = vmor %vm303, %vm304
    %v306 = vsel %vm305, %v298, %v302
    %v307 = vand.u32 2147483647, %v262
    %vm308 = vcmp.eq.f32.partialorder %v307, 8.507059e+37
    %v309 = vand.u32 %v262, 2147483648
    %v310 = vor.u32 1.1754944e-38, %v309
    %v311 = vsel %vm308, %v310, %v306
    %v312 = vmul.f32 %v229, %v311
    %v313 = vrcp.pop %v263
    %v314 = vmul.f32 %v263, %v313
    %v315 = vsub.f32 1.0, %v314
    %v316 = vmul.f32 %v313, %v315
    %v317 = vadd.f32 %v313, %v316
    %vm318 = vweird.f32 %v263
    %vm319 = vweird.f32 %v313
    %vm320 = vmor %vm318, %vm319
    %v321 = vsel %vm320, %v313, %v317
    %v322 = vand.u32 2147483647, %v263
    %vm323 = vcmp.eq.f32.partialorder %v322, 8.507059e+37
    %v324 = vand.u32 %v263, 2147483648
    %v325 = vor.u32 1.1754944e-38, %v324
    %v326 = vsel %vm323, %v325, %v321
    %v327 = vmul.f32 %v231, %v326
    %332 = vset.pattern.permute.xlu0 0
    %333 = vperm.xlu0 %332, %v282
    %v334 = vpop.permute.xlu0 %333
    %335 = vset.pattern.permute.xlu0 0
    %336 = vperm.xlu0 %335, %v297
    %v337 = vpop.permute.xlu0 %336
    %338 = vset.pattern.permute.xlu0 0
    %339 = vperm.xlu0 %338, %v312
    %v340 = vpop.permute.xlu0 %339
    %341 = vset.pattern.permute.xlu0 0
    %342 = vperm.xlu0 %341, %v327
    %v343 = vpop.permute.xlu0 %342
    %v344 = vperm.slane %v334, %v195
    %v345 = vperm.slane %v337, %v195
    %v346 = vperm.slane %v340, %v195
    %v347 = vperm.slane %v343, %v195
    %v348 = vsel %vm200, %v345, %v344
    %v349 = vsel %vm202, %v346, %v348
    %v350 = vsel %vm204, %v347, %v349
    %352 = vst.msk [vmem:[#allocation9] sm:$0xf] %vm207, %v350
    %v357 = vmul.f32 %v334, %v63
    %v358 = vmul.f32 %v337, %v64
    %v359 = vmul.f32 %v340, %v65
    %v360 = vmul.f32 %v343, %v66
    %v361 = vrot.slane %v357, 4
    %v362 = vadd.f32 %v357, %v361
    %v363 = vrot.slane %v362, 2
    %v364 = vadd.f32 %v362, %v363
    %v365 = vrot.slane %v364, 1
    %v366 = vadd.f32 %v364, %v365
    %v367 = vrot.slane %v358, 4
    %v368 = vadd.f32 %v358, %v367
    %v369 = vrot.slane %v368, 2
    %v370 = vadd.f32 %v368, %v369
    %v371 = vrot.slane %v370, 1
    %v372 = vadd.f32 %v370, %v371
    %v373 = vrot.slane %v359, 4
    %v374 = vadd.f32 %v359, %v373
    %v375 = vrot.slane %v374, 2
    %v376 = vadd.f32 %v374, %v375
    %v377 = vrot.slane %v376, 1
    %v378 = vadd.f32 %v376, %v377
    %v379 = vrot.slane %v360, 4
    %v380 = vadd.f32 %v360, %v379
    %v381 = vrot.slane %v380, 2
    %v382 = vadd.f32 %v380, %v381
    %v383 = vrot.slane %v382, 1
    %v384 = vadd.f32 %v382, %v383
    %v389 = vsel %vm200, %v372, %v366
    %v390 = vsel %vm202, %v378, %v389
    %v391 = vsel %vm204, %v384, %v390
    %393 = vst [vmem:[#allocation8] sm:$0xf] %v391
    // Predicated region
    $region26: #{tpu_custom_call.1} parent=1 // pred_check
      _
    $region27: #{tpu_custom_call.1} parent=1 // pred_check_branch
      %395 = sbr.rel (0) target = $region29
    $region28: #{tpu_custom_call.1} parent=1 // pred_region
      %397 = vsyncadd [#allocation4], 0
      %s399 = sshll.u32 [#allocation8], 4
      %s400 = int_to_ptr.vmem [resolvable:$true] %s399
      %s401 = sshll.u32 %s3, 4
      %s402 = int_to_ptr.hbm [resolvable:$true] %s401
      %404 = dma.vmem_to_hbm [thread:$0]  %s400, 64, %s402, [#allocation4]
    $region29: #{tpu_custom_call.1} parent=1 // pred_fallthru
      _
    // Predicated region
    $region30: #{tpu_custom_call.1} parent=1 // pred_check
      _
    $region31: #{tpu_custom_call.1} parent=1 // pred_check_branch
      %406 = sbr.rel (0) target = $region33
    $region32: #{tpu_custom_call.1} parent=1 // pred_region
      %408 = vsyncadd [#allocation10], 0
      %s410 = sshll.u32 [#allocation9], 4
      %s411 = int_to_ptr.vmem [resolvable:$true] %s410
      %s412 = sshll.u32 %s4, 4
      %s413 = int_to_ptr.hbm [resolvable:$true] %s412
      %415 = dma.vmem_to_hbm [thread:$0]  %s411, 64, %s413, [#allocation10]
    $region33: #{tpu_custom_call.1} parent=1 // pred_fallthru
      _
    // Predicated region
    $region34: #{tpu_custom_call.1} parent=1 // pred_check
      _
    $region35: #{tpu_custom_call.1} parent=1 // pred_check_branch
      %417 = sbr.rel (0) target = $region37
    $region36: #{tpu_custom_call.1} parent=1 // pred_region
      %419 = dma.done [#allocation4], 64
    $region37: #{tpu_custom_call.1} parent=1 // pred_fallthru
      _
    // Predicated region
    $region38: #{tpu_custom_call.1} parent=1 // pred_check
      _
    $region39: #{tpu_custom_call.1} parent=1 // pred_check_branch
      %421 = sbr.rel (0) target = $region41
    $region40: #{tpu_custom_call.1} parent=1 // pred_region
      %423 = dma.done [#allocation10], 64
    $region41: #{tpu_custom_call.1} parent=1 // pred_fallthru
      _
    %424 = vsyncpa [#allocation3], 1
    %425 = vsyncpa [#allocation6], 1
    %426 = vsyncpa [#allocation4], 1
    %427 = vsyncpa [#allocation10], 1

</llo_original>
